<compile_context>
chip_gen: v7x
topology: tpu7x:2x2x1
jax: 0.10.0
libtpu: 0.0.40
codegen_flags: <defaults>
</compile_context>

<pallas_src>
import functools

import jax
import jax.numpy as jnp
from jax.experimental import pallas as pl
from jax.experimental.pallas import tpu as pltpu

HID1, HID2 = 200, 100           # original torch hidden sizes
HID1_PAD, HID2_PAD = 256, 128   # lane-aligned padded hidden sizes
HEAD_PAD = 128                  # fused (softmax | sigmoid) head, padded to 128 lanes


def _round_up(x, m):
    return ((x + m - 1) // m) * m


def actor_kernel(action_dim, state_ref, w1_ref, b1_ref, w2_ref, b2_ref,
                 wh_ref, bh_ref, out_ref):
    # lin1 + ReLU  (bf16 MXU inputs, f32 accumulate)
    h1 = jnp.dot(state_ref[...], w1_ref[...],
                 preferred_element_type=jnp.float32) + b1_ref[...]
    h1 = jnp.maximum(h1, 0.0)

    # lin2 + ReLU
    h2 = jnp.dot(h1.astype(jnp.bfloat16), w2_ref[...],
                 preferred_element_type=jnp.float32) + b2_ref[...]
    h2 = jnp.maximum(h2, 0.0)

    # Fused heads: one matmul; lanes [0, action_dim) are discrete logits,
    # lanes [action_dim, action_dim + param_dim) are continuous params.
    head = jnp.dot(h2.astype(jnp.bfloat16), wh_ref[...],
                   preferred_element_type=jnp.float32) + bh_ref[...]

    col = jax.lax.broadcasted_iota(jnp.int32, head.shape, 1)
    is_disc = col < action_dim

    # Masked, numerically stable softmax over the discrete lanes only.
    logits = jnp.where(is_disc, head, -jnp.inf)
    m = jnp.max(logits, axis=-1, keepdims=True)
    e = jnp.exp(logits - m)                       # masked lanes -> exp(-inf) = 0
    denom = jnp.sum(e, axis=-1, keepdims=True)
    p_disc = e * pl.reciprocal(denom, approx=True)

    # Sigmoid on all lanes (EUP exp + EUP approx reciprocal); only the
    # continuous lanes are kept by the final select / wrapper slice.
    p_sig = pl.reciprocal(1.0 + jnp.exp(-head), approx=True)

    out_ref[...] = jnp.where(is_disc, p_disc, p_sig)


def init_params(key, state_dim, action_dim, param_dim):
    """Deterministic synthetic parameters (torch Linear init). Weights stored [in, out]."""
    ks = jax.random.split(key, 8)

    def lin(kw, kb, fan_in, fan_out):
        bound = 1.0 / jnp.sqrt(fan_in)
        w = jax.random.uniform(kw, (fan_in, fan_out), jnp.float32, -bound, bound)
        b = jax.random.uniform(kb, (1, fan_out), jnp.float32, -bound, bound)
        return w, b

    w1, b1 = lin(ks[0], ks[1], state_dim, HID1)
    w2, b2 = lin(ks[2], ks[3], HID1, HID2)
    wd, bd = lin(ks[4], ks[5], HID2, action_dim)
    wc, bc = lin(ks[6], ks[7], HID2, param_dim)
    return dict(w1=w1, b1=b1, w2=w2, b2=b2, wd=wd, bd=bd, wc=wc, bc=bc)


def prepare_params(raw, action_dim, param_dim, compute_dtype=jnp.bfloat16):
    """Zero-pad hidden dims to 256/128, fuse + lane-pad the two heads, cast
    weights to the MXU compute dtype (biases stay f32)."""
    state_dim = raw["w1"].shape[0]

    w1 = jnp.zeros((state_dim, HID1_PAD), jnp.float32).at[:, :HID1].set(raw["w1"])
    b1 = jnp.zeros((1, HID1_PAD), jnp.float32).at[:, :HID1].set(raw["b1"])

    w2 = jnp.zeros((HID1_PAD, HID2_PAD), jnp.float32).at[:HID1, :HID2].set(raw["w2"])
    b2 = jnp.zeros((1, HID2_PAD), jnp.float32).at[:, :HID2].set(raw["b2"])

    wh = jnp.zeros((HID2_PAD, HEAD_PAD), jnp.float32)
    wh = wh.at[:HID2, :action_dim].set(raw["wd"])
    wh = wh.at[:HID2, action_dim:action_dim + param_dim].set(raw["wc"])
    bh = jnp.zeros((1, HEAD_PAD), jnp.float32)
    bh = bh.at[:, :action_dim].set(raw["bd"])
    bh = bh.at[:, action_dim:action_dim + param_dim].set(raw["bc"])

    return dict(
        w1=w1.astype(compute_dtype), b1=b1,
        w2=w2.astype(compute_dtype), b2=b2,
        wh=wh.astype(compute_dtype), bh=bh,
    )


def actor_forward(state, prep, action_dim, param_dim, block_b=None):
    """state: [B, state_dim] f32. prep: output of prepare_params."""
    B, state_dim = state.shape

    if block_b is None:
        # >=512 rows per tile reaches ~85% of HBM roofline; tiny batches just
        # round up to the sublane multiple.
        block_b = 512 if B >= 512 else _round_up(B, 8)
    block_b = _round_up(block_b, 8)
    B_pad = _round_up(B, block_b)

    x = state.astype(jnp.bfloat16)
    if B_pad != B:
        x = jnp.zeros((B_pad, state_dim), jnp.bfloat16).at[:B].set(x)

    grid = (B_pad // block_b,)
    const = lambda i: (0, 0)   # weights/biases: same block every step -> VMEM resident

    out = pl.pallas_call(
        functools.partial(actor_kernel, action_dim),
        out_shape=jax.ShapeDtypeStruct((B_pad, HEAD_PAD), jnp.float32),
        grid=grid,
        in_specs=[
            pl.BlockSpec((block_b, state_dim), lambda i: (i, 0)),
            pl.BlockSpec(prep["w1"].shape, const),
            pl.BlockSpec(prep["b1"].shape, const),
            pl.BlockSpec(prep["w2"].shape, const),
            pl.BlockSpec(prep["b2"].shape, const),
            pl.BlockSpec(prep["wh"].shape, const),
            pl.BlockSpec(prep["bh"].shape, const),
        ],
        out_specs=pl.BlockSpec((block_b, HEAD_PAD), lambda i: (i, 0)),
        compiler_params=pltpu.CompilerParams(
            dimension_semantics=("parallel",)),
    )(x, prep["w1"], prep["b1"], prep["w2"], prep["b2"], prep["wh"], prep["bh"])

    # Lane-dense slab -> slice the two heads in the wrapper (layout plumbing only).
    x1 = out[:B, :action_dim]
    x2 = out[:B, action_dim:action_dim + param_dim]
    return x1, x2


def reference_prepared(state, prep, action_dim, param_dim):
    """Pure-JAX reference doing the same padded / bf16 math as the kernel."""
    x = state.astype(jnp.bfloat16)
    h1 = jnp.maximum(jnp.dot(x, prep["w1"], preferred_element_type=jnp.float32)
                     + prep["b1"], 0.0)
    h2 = jnp.maximum(jnp.dot(h1.astype(jnp.bfloat16), prep["w2"],
                             preferred_element_type=jnp.float32) + prep["b2"], 0.0)
    head = jnp.dot(h2.astype(jnp.bfloat16), prep["wh"],
                   preferred_element_type=jnp.float32) + prep["bh"]
    x1 = jax.nn.softmax(head[:, :action_dim], axis=-1)
    x2 = jax.nn.sigmoid(head[:, action_dim:action_dim + param_dim])
    return x1, x2


def reference_f32(state, raw):
    """Pure-JAX f32 reference of the original (unpadded) module semantics."""
    x = jnp.maximum(state @ raw["w1"] + raw["b1"], 0.0)
    x = jnp.maximum(x @ raw["w2"] + raw["b2"], 0.0)
    x1 = jax.nn.softmax(x @ raw["wd"] + raw["bd"], axis=-1)
    x2 = jax.nn.sigmoid(x @ raw["wc"] + raw["bc"])
    return x1, x2


if __name__ == "__main__":
    # TODO(synk): bn1/bn2 (BatchNorm1d) exist in __init__ but are unused in forward; omitted.
    key = jax.random.PRNGKey(0)
    k_state, k_params, k_big = jax.random.split(key, 3)

    # Small shapes implied by the module: cf.state_dim, cf.action_dim, cf.param_dim
    batch, state_dim, action_dim, param_dim = 2, 32, 8, 4

    state = jax.random.normal(k_state, (batch, state_dim), jnp.float32)
    raw = init_params(k_params, state_dim, action_dim, param_dim)
    prep = prepare_params(raw, action_dim, param_dim)

    x1, x2 = actor_forward(state, prep, action_dim, param_dim)
    jax.block_until_ready((x1, x2))

    assert x1.shape == (batch, action_dim) and x2.shape == (batch, param_dim)

    # Tight check vs. same-precision (padded bf16) reference.
    r1, r2 = reference_prepared(state, prep, action_dim, param_dim)
    assert jnp.allclose(x1, r1, atol=5e-3, rtol=5e-3)
    assert jnp.allclose(x2, r2, atol=5e-3, rtol=5e-3)
    assert jnp.allclose(jnp.sum(x1, axis=-1), 1.0, atol=5e-3)

    # Looser check vs. the original f32, unpadded semantics (bf16 weight cast).
    f1, f2 = reference_f32(state, raw)
    assert jnp.allclose(x1, f1, atol=3e-2, rtol=5e-2)
    assert jnp.allclose(x2, f2, atol=3e-2, rtol=5e-2)

    # Secondary check exercising the batch grid (multiple tiles + batch padding).
    big_B = 300
    big_state = jax.random.normal(k_big, (big_B, state_dim), jnp.float32)
    b1_out, b2_out = actor_forward(big_state, prep, action_dim, param_dim, block_b=128)
    jax.block_until_ready((b1_out, b2_out))
    rb1, rb2 = reference_prepared(big_state, prep, action_dim, param_dim)
    assert b1_out.shape == (big_B, action_dim) and b2_out.shape == (big_B, param_dim)
    assert jnp.allclose(b1_out, rb1, atol=5e-3, rtol=5e-3)
    assert jnp.allclose(b2_out, rb2, atol=5e-3, rtol=5e-3)

    print("KERNEL_OK")
</pallas_src>

<mosaic_0001>
module attributes {stable_mosaic.version = 11 : i64} {
  func.func @actor_kernel(%arg0: i32, %arg1: memref<8x32xbf16, #tpu.memory_space<vmem>>, %arg2: memref<32x256xbf16, #tpu.memory_space<vmem>>, %arg3: memref<1x256xf32, #tpu.memory_space<vmem>>, %arg4: memref<256x128xbf16, #tpu.memory_space<vmem>>, %arg5: memref<1x128xf32, #tpu.memory_space<vmem>>, %arg6: memref<128x128xbf16, #tpu.memory_space<vmem>>, %arg7: memref<1x128xf32, #tpu.memory_space<vmem>>, %arg8: memref<8x128xf32, #tpu.memory_space<vmem>>) attributes {dimension_semantics = [#tpu.dimension_semantics<parallel>], iteration_bounds = array<i64: 1>, scalar_prefetch = 0 : i64, scratch_operands = 0 : i64, tpu.core_type = #tpu.core_type<tc>, window_params = [{transform_indices = @transform_0, window_bounds = array<i64: 8, 32>}, {pipeline_mode = #tpu.pipeline_mode<synchronous>, transform_indices = @transform_1, window_bounds = array<i64: 32, 256>}, {pipeline_mode = #tpu.pipeline_mode<synchronous>, transform_indices = @transform_2, window_bounds = array<i64: 1, 256>}, {pipeline_mode = #tpu.pipeline_mode<synchronous>, transform_indices = @transform_3, window_bounds = array<i64: 256, 128>}, {pipeline_mode = #tpu.pipeline_mode<synchronous>, transform_indices = @transform_4, window_bounds = array<i64: 1, 128>}, {pipeline_mode = #tpu.pipeline_mode<synchronous>, transform_indices = @transform_5, window_bounds = array<i64: 128, 128>}, {pipeline_mode = #tpu.pipeline_mode<synchronous>, transform_indices = @transform_6, window_bounds = array<i64: 1, 128>}, {transform_indices = @transform_7, window_bounds = array<i64: 8, 128>}]} {
    %c0 = arith.constant 0 : index
    %c0_0 = arith.constant 0 : index
    %0 = vector.load %arg1[%c0, %c0_0] : memref<8x32xbf16, #tpu.memory_space<vmem>>, vector<8x32xbf16>
    %c0_1 = arith.constant 0 : index
    %c0_2 = arith.constant 0 : index
    %1 = vector.load %arg2[%c0_1, %c0_2] : memref<32x256xbf16, #tpu.memory_space<vmem>>, vector<32x256xbf16>
    %cst = arith.constant dense<0.000000e+00> : vector<8x256xf32>
    %2 = tpu.matmul %0, %1, %cst {dimension_numbers = #tpu.dot_dimension_numbers<[1], [0], [0], [1], [0, 0, 1, 1], [], []>} : vector<8x32xbf16>, vector<32x256xbf16>, vector<8x256xf32> -> vector<8x256xf32>
    %c0_3 = arith.constant 0 : index
    %c0_4 = arith.constant 0 : index
    %3 = vector.load %arg3[%c0_3, %c0_4] : memref<1x256xf32, #tpu.memory_space<vmem>>, vector<1x256xf32>
    %4 = vector.broadcast %3 : vector<1x256xf32> to vector<8x256xf32>
    %5 = arith.addf %2, %4 : vector<8x256xf32>
    %cst_5 = arith.constant 0.000000e+00 : f32
    %6 = vector.broadcast %cst_5 : f32 to vector<8x256xf32>
    %7 = arith.maximumf %5, %6 : vector<8x256xf32>
    %8 = arith.truncf %7 : vector<8x256xf32> to vector<8x256xbf16>
    %c0_6 = arith.constant 0 : index
    %c0_7 = arith.constant 0 : index
    %9 = vector.load %arg4[%c0_6, %c0_7] : memref<256x128xbf16, #tpu.memory_space<vmem>>, vector<256x128xbf16>
    %cst_8 = arith.constant dense<0.000000e+00> : vector<8x128xf32>
    %10 = tpu.matmul %8, %9, %cst_8 {dimension_numbers = #tpu.dot_dimension_numbers<[1], [0], [0], [1], [0, 0, 1, 1], [], []>} : vector<8x256xbf16>, vector<256x128xbf16>, vector<8x128xf32> -> vector<8x128xf32>
    %c0_9 = arith.constant 0 : index
    %c0_10 = arith.constant 0 : index
    %11 = vector.load %arg5[%c0_9, %c0_10] : memref<1x128xf32, #tpu.memory_space<vmem>>, vector<1x128xf32>
    %12 = vector.broadcast %11 : vector<1x128xf32> to vector<8x128xf32>
    %13 = arith.addf %10, %12 : vector<8x128xf32>
    %cst_11 = arith.constant 0.000000e+00 : f32
    %14 = vector.broadcast %cst_11 : f32 to vector<8x128xf32>
    %15 = arith.maximumf %13, %14 : vector<8x128xf32>
    %16 = arith.truncf %15 : vector<8x128xf32> to vector<8x128xbf16>
    %c0_12 = arith.constant 0 : index
    %c0_13 = arith.constant 0 : index
    %17 = vector.load %arg6[%c0_12, %c0_13] : memref<128x128xbf16, #tpu.memory_space<vmem>>, vector<128x128xbf16>
    %cst_14 = arith.constant dense<0.000000e+00> : vector<8x128xf32>
    %18 = tpu.matmul %16, %17, %cst_14 {dimension_numbers = #tpu.dot_dimension_numbers<[1], [0], [0], [1], [0, 0, 1, 1], [], []>} : vector<8x128xbf16>, vector<128x128xbf16>, vector<8x128xf32> -> vector<8x128xf32>
    %c0_15 = arith.constant 0 : index
    %c0_16 = arith.constant 0 : index
    %19 = vector.load %arg7[%c0_15, %c0_16] : memref<1x128xf32, #tpu.memory_space<vmem>>, vector<1x128xf32>
    %20 = vector.broadcast %19 : vector<1x128xf32> to vector<8x128xf32>
    %21 = arith.addf %18, %20 : vector<8x128xf32>
    %22 = tpu.iota {dimensions = array<i32: 1>} : vector<8x128xi32>
    %c8_i32 = arith.constant 8 : i32
    %23 = vector.broadcast %c8_i32 : i32 to vector<8x128xi32>
    %24 = arith.cmpi slt, %22, %23 : vector<8x128xi32>
    %cst_17 = arith.constant 0xFF800000 : f32
    %25 = vector.broadcast %cst_17 : f32 to vector<8x128xf32>
    %26 = arith.select %24, %21, %25 : vector<8x128xi1>, vector<8x128xf32>
    %cst_18 = arith.constant dense<0xFF800000> : vector<8xf32>
    %27 = vector.multi_reduction <maximumf>, %26, %cst_18 [1] : vector<8x128xf32> to vector<8xf32>
    %28 = vector.shape_cast %27 : vector<8xf32> to vector<8x1xf32>
    %29 = vector.broadcast %28 : vector<8x1xf32> to vector<8x128xf32>
    %30 = arith.subf %26, %29 : vector<8x128xf32>
    %31 = math.exp %30 : vector<8x128xf32>
    %cst_19 = arith.constant dense<0.000000e+00> : vector<8xf32>
    %32 = vector.multi_reduction <add>, %31, %cst_19 [1] : vector<8x128xf32> to vector<8xf32>
    %33 = vector.shape_cast %32 : vector<8xf32> to vector<8x1xf32>
    %34 = tpu.reciprocal %33 {approx = true} : vector<8x1xf32> -> vector<8x1xf32>
    %35 = vector.broadcast %34 : vector<8x1xf32> to vector<8x128xf32>
    %36 = arith.mulf %31, %35 : vector<8x128xf32>
    %cst_20 = arith.constant 0.000000e+00 : f32
    %37 = vector.broadcast %cst_20 : f32 to vector<8x128xf32>
    %38 = arith.subf %37, %21 : vector<8x128xf32>
    %39 = math.exp %38 : vector<8x128xf32>
    %cst_21 = arith.constant 1.000000e+00 : f32
    %40 = vector.broadcast %cst_21 : f32 to vector<8x128xf32>
    %41 = arith.addf %40, %39 : vector<8x128xf32>
    %42 = tpu.reciprocal %41 {approx = true} : vector<8x128xf32> -> vector<8x128xf32>
    %43 = arith.select %24, %36, %42 : vector<8x128xi1>, vector<8x128xf32>
    %c0_22 = arith.constant 0 : index
    %c0_23 = arith.constant 0 : index
    %44 = vector.load %arg8[%c0_22, %c0_23] : memref<8x128xf32, #tpu.memory_space<vmem>>, vector<8x128xf32>
    tpu.vector_store %arg8[%c0_22, %c0_23], %43 {strides = array<i32>} : memref<8x128xf32, #tpu.memory_space<vmem>>, vector<8x128xf32>,
    return
  }
  func.func @transform_0(%arg0: i32) -> (i32, i32) {
    %c0_i32 = arith.constant 0 : i32
    %c0_i32_0 = arith.constant 0 : i32
    return %arg0, %c0_i32 : i32, i32
  }
  func.func @transform_1(%arg0: i32) -> (i32, i32) {
    %c0_i32 = arith.constant 0 : i32
    %c0_i32_0 = arith.constant 0 : i32
    %c0_i32_1 = arith.constant 0 : i32
    return %c0_i32, %c0_i32_0 : i32, i32
  }
  func.func @transform_2(%arg0: i32) -> (i32, i32) {
    %c0_i32 = arith.constant 0 : i32
    %c0_i32_0 = arith.constant 0 : i32
    %c0_i32_1 = arith.constant 0 : i32
    return %c0_i32, %c0_i32_0 : i32, i32
  }
  func.func @transform_3(%arg0: i32) -> (i32, i32) {
    %c0_i32 = arith.constant 0 : i32
    %c0_i32_0 = arith.constant 0 : i32
    %c0_i32_1 = arith.constant 0 : i32
    return %c0_i32, %c0_i32_0 : i32, i32
  }
  func.func @transform_4(%arg0: i32) -> (i32, i32) {
    %c0_i32 = arith.constant 0 : i32
    %c0_i32_0 = arith.constant 0 : i32
    %c0_i32_1 = arith.constant 0 : i32
    return %c0_i32, %c0_i32_0 : i32, i32
  }
  func.func @transform_5(%arg0: i32) -> (i32, i32) {
    %c0_i32 = arith.constant 0 : i32
    %c0_i32_0 = arith.constant 0 : i32
    %c0_i32_1 = arith.constant 0 : i32
    return %c0_i32, %c0_i32_0 : i32, i32
  }
  func.func @transform_6(%arg0: i32) -> (i32, i32) {
    %c0_i32 = arith.constant 0 : i32
    %c0_i32_0 = arith.constant 0 : i32
    %c0_i32_1 = arith.constant 0 : i32
    return %c0_i32, %c0_i32_0 : i32, i32
  }
  func.func @transform_7(%arg0: i32) -> (i32, i32) {
    %c0_i32 = arith.constant 0 : i32
    %c0_i32_0 = arith.constant 0 : i32
    return %arg0, %c0_i32 : i32, i32
  }
}

</mosaic_0001>

<llo_original>
// kernel: tpu_custom_call.1
$region0: #{tpu_custom_call.1}
  #allocation0 [shape = 'u32[]', space=smem, size = 0x4, offset = 0x4, fixed_abs, tag = 'smem constant byte address 0x4 - core index']
  #allocation1 [shape = 'u32[144,128]{1,0:T(1,128)}', space=vmem, size = 0x12000, scoped, tag = 'internal scratch']
  %s0 = inlined_call_operand.hbm [shape: bf16[8,32], index: 0, kind: input, shape index: {}]
  %s1 = inlined_call_operand.hbm [shape: bf16[32,256], index: 1, kind: input, shape index: {}]
  %s2 = inlined_call_operand.vmem [shape: f32[1,256], index: 2, kind: input, shape index: {}]
  %s3 = inlined_call_operand.hbm [shape: bf16[256,128], index: 3, kind: input, shape index: {}]
  %s4 = inlined_call_operand.vmem [shape: f32[1,128], index: 4, kind: input, shape index: {}]
  %s5 = inlined_call_operand.hbm [shape: bf16[128,128], index: 5, kind: input, shape index: {}]
  %s6 = inlined_call_operand.vmem [shape: f32[1,128], index: 6, kind: input, shape index: {}]
  %s7 = inlined_call_operand.hbm [shape: f32[8,128], index: 7, kind: output, shape index: {}]
  %s8 = sld [smem:[#allocation0]]
  $region54: #{tpu_custom_call.1} parent=0
    _
  %s10 = ssub.s32 1, %s8
  %s11 = scalar_select 0, %s10, %s8
  $region1: #{tpu_custom_call.1} parent=0
    #allocation2 [shape = 'u8[2048]{0}', space=vmem, size = 0x800, scoped, tag = 'input window, operand 0, single buffered']
    #allocation3 [shape = 's32[1]{0}', space=sflag, size = 0x4, scoped, tag = 'scoped memory for tpu_custom_call.1']
    #allocation4 [shape = 's32[1]{0}', space=sflag, size = 0x4, scoped, tag = 'scoped memory for tpu_custom_call.1']
    #allocation5 [shape = 'u8[16384]{0}', space=vmem, size = 0x4000, scoped, tag = 'input window, operand 1, single buffered']
    #allocation6 [shape = 's32[1]{0}', space=sflag, size = 0x4, scoped, tag = 'scoped memory for tpu_custom_call.1']
    #allocation7 [shape = 'u8[65536]{0}', space=vmem, size = 0x10000, scoped, tag = 'input window, operand 3, single buffered']
    #allocation8 [shape = 'u8[32768]{0}', space=vmem, size = 0x8000, scoped, tag = 'input window, operand 5, single buffered']
    #allocation9 [shape = 's32[1]{0}', space=sflag, size = 0x4, scoped, tag = 'scoped memory for tpu_custom_call.1']
    #allocation10 [shape = 'u8[4096]{0}', space=vmem, size = 0x1000, scoped, tag = 'output window, operand 0, single buffered']
    %12 = vsyncpa [#allocation3], 0
    %13 = vsyncpa [#allocation6], 0
    %14 = vsyncpa [#allocation9], 0
    %15 = vsyncpa [#allocation4], 0
    // Predicated region
    $region2: #{tpu_custom_call.1} parent=1 // pred_check
      _
    $region3: #{tpu_custom_call.1} parent=1 // pred_check_branch
      %17 = sbr.rel (0) target = $region5
    $region4: #{tpu_custom_call.1} parent=1 // pred_region
      %s19 = ssub.s32 64, 64
      %20 = vsyncadd [#allocation3], %s19
      %s22 = sshll.u32 [#allocation2], 4
      %s23 = int_to_ptr.vmem [resolvable:$true] %s22
      %25 = dma.hbm_to_vmem [thread:$0]  %s0, 64, %s23, [#allocation3]
    $region5: #{tpu_custom_call.1} parent=1 // pred_fallthru
      _
    // Predicated region
    $region6: #{tpu_custom_call.1} parent=1 // pred_check
      _
    $region7: #{tpu_custom_call.1} parent=1 // pred_check_branch
      %27 = sbr.rel (0) target = $region9
    $region8: #{tpu_custom_call.1} parent=1 // pred_region
      %s29 = ssub.s32 512, 512
      %30 = vsyncadd [#allocation6], %s29
      %s31 = sshll.u32 [#allocation5], 4
      %s32 = int_to_ptr.vmem [resolvable:$true] %s31
      %37 = dma.hbm_to_vmem [thread:$0]  %s1, 512, %s32, [#allocation6], 128, 128, 8
    $region9: #{tpu_custom_call.1} parent=1 // pred_fallthru
      _
    // Predicated region
    $region10: #{tpu_custom_call.1} parent=1 // pred_check
      _
    $region11: #{tpu_custom_call.1} parent=1 // pred_check_branch
      %39 = sbr.rel (0) target = $region13
    $region12: #{tpu_custom_call.1} parent=1 // pred_region
      _
    $region13: #{tpu_custom_call.1} parent=1 // pred_fallthru
      _
    // Predicated region
    $region14: #{tpu_custom_call.1} parent=1 // pred_check
      _
    $region15: #{tpu_custom_call.1} parent=1 // pred_check_branch
      %41 = sbr.rel (0) target = $region17
    $region16: #{tpu_custom_call.1} parent=1 // pred_region
      %s43 = ssub.s32 2048, 2048
      %44 = vsyncadd [#allocation6], %s43
      %s45 = sshll.u32 [#allocation7], 4
      %s46 = int_to_ptr.vmem [resolvable:$true] %s45
      %51 = dma.hbm_to_vmem [thread:$0]  %s3, 2048, %s46, [#allocation6], 64, 64, 4
    $region17: #{tpu_custom_call.1} parent=1 // pred_fallthru
      _
    // Predicated region
    $region18: #{tpu_custom_call.1} parent=1 // pred_check
      _
    $region19: #{tpu_custom_call.1} parent=1 // pred_check_branch
      %53 = sbr.rel (0) target = $region21
    $region20: #{tpu_custom_call.1} parent=1 // pred_region
      _
    $region21: #{tpu_custom_call.1} parent=1 // pred_fallthru
      _
    // Predicated region
    $region22: #{tpu_custom_call.1} parent=1 // pred_check
      _
    $region23: #{tpu_custom_call.1} parent=1 // pred_check_branch
      %55 = sbr.rel (0) target = $region25
    $region24: #{tpu_custom_call.1} parent=1 // pred_region
      %s57 = ssub.s32 1024, 1024
      %58 = vsyncadd [#allocation9], %s57
      %s59 = sshll.u32 [#allocation8], 4
      %s60 = int_to_ptr.vmem [resolvable:$true] %s59
      %65 = dma.hbm_to_vmem [thread:$0]  %s5, 1024, %s60, [#allocation9], 64, 64, 4
    $region25: #{tpu_custom_call.1} parent=1 // pred_fallthru
      _
    // Predicated region
    $region26: #{tpu_custom_call.1} parent=1 // pred_check
      _
    $region27: #{tpu_custom_call.1} parent=1 // pred_check_branch
      %67 = sbr.rel (0) target = $region29
    $region28: #{tpu_custom_call.1} parent=1 // pred_region
      _
    $region29: #{tpu_custom_call.1} parent=1 // pred_fallthru
      _
    // Predicated region
    $region30: #{tpu_custom_call.1} parent=1 // pred_check
      _
    $region31: #{tpu_custom_call.1} parent=1 // pred_check_branch
      %69 = sbr.rel (0) target = $region33
    $region32: #{tpu_custom_call.1} parent=1 // pred_region
      %70 = dma.done [#allocation3], 64
    $region33: #{tpu_custom_call.1} parent=1 // pred_fallthru
      _
    // Predicated region
    $region34: #{tpu_custom_call.1} parent=1 // pred_check
      _
    $region35: #{tpu_custom_call.1} parent=1 // pred_check_branch
      %72 = sbr.rel (0) target = $region37
    $region36: #{tpu_custom_call.1} parent=1 // pred_region
      %73 = dma.done [#allocation6], 512
    $region37: #{tpu_custom_call.1} parent=1 // pred_fallthru
      _
    // Predicated region
    $region38: #{tpu_custom_call.1} parent=1 // pred_check
      _
    $region39: #{tpu_custom_call.1} parent=1 // pred_check_branch
      %75 = sbr.rel (0) target = $region41
    $region40: #{tpu_custom_call.1} parent=1 // pred_region
      %76 = dma.done [#allocation6], 2048
    $region41: #{tpu_custom_call.1} parent=1 // pred_fallthru
      _
    // Predicated region
    $region42: #{tpu_custom_call.1} parent=1 // pred_check
      _
    $region43: #{tpu_custom_call.1} parent=1 // pred_check_branch
      %78 = sbr.rel (0) target = $region45
    $region44: #{tpu_custom_call.1} parent=1 // pred_region
      %79 = dma.done [#allocation9], 1024
    $region45: #{tpu_custom_call.1} parent=1 // pred_fallthru
      _
    %v81 = vld [vmem:[#allocation2] sm:$0xf]
    %v82 = vld [vmem:[#allocation5] sm:$0xff]
    %v83 = vld [vmem:[#allocation5 + $0x8] sm:$0xff]
    %v84 = vld [vmem:[#allocation5 + $0x10] sm:$0xff]
    %v85 = vld [vmem:[#allocation5 + $0x18] sm:$0xff]
    %v86 = vld [vmem:[%s2] sm:$0x3]
    %v88 = vlaneseq
    %v89 = vshrl.u32 %v88, 7
    %v90 = vsub.s32 0, %v89
    %v91 = vrot.slane %v86, %v90
    %v92 = vlaneseq
    %v93 = vshrl.u32 %v92, 7
    %v94 = vsub.s32 1, %v93
    %v95 = vrot.slane %v86, %v94
    %v102 = vunpack.c.l.b16 %v82
    %v103 = vunpack.c.h.b16 %v82
    %v104 = vunpack.c.l.b16 %v83
    %v105 = vunpack.c.h.b16 %v83
    %v106 = vunpack.c.l.b16 %v84
    %v107 = vunpack.c.h.b16 %v84
    %v108 = vunpack.c.l.b16 %v85
    %v109 = vunpack.c.h.b16 %v85
    %v110 = vpack.c.b16 %v104, %v102
    %v111 = vpack.c.b16 %v105, %v103
    %v112 = vpack.c.b16 %v108, %v106
    %v113 = vpack.c.b16 %v109, %v107
    %vm118 = vcmask 261120
    %v120 = vsel %vm118, %v81, 0
    %122 = vmatprep.subr.bf16.mxu0 %v111
    %123 = vmatpush1.bf16.msra.mxu0 %v110
    %124 = vmatprep.subr.bf16.mxu0 %v113
    %125 = vmatpush1.bf16.msra.mxu0 %v112
    %126 = vmatprep.subr.bf16.mxu0 0
    %127 = vmatpush1.bf16.msra.mxu0 0
    %128 = vmatprep.subr.bf16.mxu0 0
    %129 = vmatpush1.bf16.msra.mxu0 0
    %130 = vmatprep.subr.bf16.mxu0 0
    %131 = vmatpush1.bf16.msra.mxu0 0
    %132 = vmatprep.subr.bf16.mxu0 0
    %133 = vmatpush1.bf16.msra.mxu0 0
    %134 = vmatprep.subr.bf16.mxu0 0
    %135 = vmatpush1.bf16.msra.mxu0 0
    %136 = vmatprep.subr.bf16.mxu0 0
    %137 = vmatpush1.bf16.msra.mxu0 0
    %138 = vmatprep.subr.bf16.mxu0 0
    %139 = vmatpush1.bf16.msra.mxu0 0
    %140 = vmatprep.subr.bf16.mxu0 0
    %141 = vmatpush1.bf16.msra.mxu0 0
    %142 = vmatprep.subr.bf16.mxu0 0
    %143 = vmatpush1.bf16.msra.mxu0 0
    %144 = vmatprep.subr.bf16.mxu0 0
    %145 = vmatpush1.bf16.msra.mxu0 0
    %146 = vmatprep.subr.bf16.mxu0 0
    %147 = vmatpush1.bf16.msra.mxu0 0
    %148 = vmatprep.subr.bf16.mxu0 0
    %149 = vmatpush1.bf16.msra.mxu0 0
    %150 = vmatprep.subr.bf16.mxu0 0
    %151 = vmatpush1.bf16.msra.mxu0 0
    %152 = vmatprep.subr.bf16.mxu0 0
    %153 = vmatpush1.bf16.msra.mxu0 0
    %154 = vmatprep.mubr.bf16.mxu0 0
    %155 = vmatmul.mubr.bf16.gmra.mrb[0].mxu0 %v120
    %v156 = vpop.f32.mrb[0].mxu0
    %v157 = vadd.f32 %v91, %v156
    %v158 = vpop.f32.mrb[0].mxu0
    %v159 = vadd.f32 %v95, %v158
    %v160 = vpop.f32.mrb[0].mxu0
    %v161 = vpop.f32.mrb[0].mxu0
    %162 = vdwg.mxu0
    %v163 = vmax.f32 %v157, 0.0
    %v164 = vmax.f32 %v159, 0.0
    %v165 = vpack.c.bf16 %v163, %v163
    %v166 = vpack.c.bf16 %v164, %v164
    %v167 = vld [vmem:[#allocation7] sm:$0xf]
    %v168 = vld [vmem:[#allocation7 + $0x4] sm:$0xf]
    %v169 = vld [vmem:[#allocation7 + $0x8] sm:$0xf]
    %v170 = vld [vmem:[#allocation7 + $0xc] sm:$0xf]
    %v171 = vld [vmem:[#allocation7 + $0x10] sm:$0xf]
    %v172 = vld [vmem:[#allocation7 + $0x14] sm:$0xf]
    %v173 = vld [vmem:[#allocation7 + $0x18] sm:$0xf]
    %v174 = vld [vmem:[#allocation7 + $0x1c] sm:$0xf]
    %v175 = vld [vmem:[#allocation7 + $0x20] sm:$0xf]
    %v176 = vld [vmem:[#allocation7 + $0x24] sm:$0xf]
    %v177 = vld [vmem:[#allocation7 + $0x28] sm:$0xf]
    %v178 = vld [vmem:[#allocation7 + $0x2c] sm:$0xf]
    %v179 = vld [vmem:[#allocation7 + $0x30] sm:$0xf]
    %v180 = vld [vmem:[#allocation7 + $0x34] sm:$0xf]
    %v181 = vld [vmem:[#allocation7 + $0x38] sm:$0xf]
    %v182 = vld [vmem:[#allocation7 + $0x3c] sm:$0xf]
    %v183 = vld [vmem:[#allocation7 + $0x40] sm:$0xf]
    %v184 = vld [vmem:[#allocation7 + $0x44] sm:$0xf]
    %v185 = vld [vmem:[#allocation7 + $0x48] sm:$0xf]
    %v186 = vld [vmem:[#allocation7 + $0x4c] sm:$0xf]
    %v187 = vld [vmem:[#allocation7 + $0x50] sm:$0xf]
    %v188 = vld [vmem:[#allocation7 + $0x54] sm:$0xf]
    %v189 = vld [vmem:[#allocation7 + $0x58] sm:$0xf]
    %v190 = vld [vmem:[#allocation7 + $0x5c] sm:$0xf]
    %v191 = vld [vmem:[#allocation7 + $0x60] sm:$0xf]
    %v192 = vld [vmem:[#allocation7 + $0x64] sm:$0xf]
    %v193 = vld [vmem:[#allocation7 + $0x68] sm:$0xf]
    %v194 = vld [vmem:[#allocation7 + $0x6c] sm:$0xf]
    %v195 = vld [vmem:[#allocation7 + $0x70] sm:$0xf]
    %v196 = vld [vmem:[#allocation7 + $0x74] sm:$0xf]
    %v197 = vld [vmem:[#allocation7 + $0x78] sm:$0xf]
    %v198 = vld [vmem:[#allocation7 + $0x7c] sm:$0xf]
    %v199 = vld [vmem:[%s4] sm:$0x1]
    %v201 = vlaneseq
    %v202 = vshrl.u32 %v201, 7
    %v203 = vsub.s32 0, %v202
    %v204 = vrot.slane %v199, %v203
    %v238 = vunpack.c.l.b16 %v167
    %v239 = vunpack.c.l.b16 %v168
    %v240 = vunpack.c.l.b16 %v169
    %v241 = vunpack.c.l.b16 %v170
    %v242 = vunpack.c.l.b16 %v171
    %v243 = vunpack.c.l.b16 %v172
    %v244 = vunpack.c.l.b16 %v173
    %v245 = vunpack.c.l.b16 %v174
    %v246 = vunpack.c.l.b16 %v175
    %v247 = vunpack.c.l.b16 %v176
    %v248 = vunpack.c.l.b16 %v177
    %v249 = vunpack.c.l.b16 %v178
    %v250 = vunpack.c.l.b16 %v179
    %v251 = vunpack.c.l.b16 %v180
    %v252 = vunpack.c.l.b16 %v181
    %v253 = vunpack.c.l.b16 %v182
    %v254 = vunpack.c.l.b16 %v183
    %v255 = vunpack.c.l.b16 %v184
    %v256 = vunpack.c.l.b16 %v185
    %v257 = vunpack.c.l.b16 %v186
    %v258 = vunpack.c.l.b16 %v187
    %v259 = vunpack.c.l.b16 %v188
    %v260 = vunpack.c.l.b16 %v189
    %v261 = vunpack.c.l.b16 %v190
    %v262 = vunpack.c.l.b16 %v191
    %v263 = vunpack.c.l.b16 %v192
    %v264 = vunpack.c.l.b16 %v193
    %v265 = vunpack.c.l.b16 %v194
    %v266 = vunpack.c.l.b16 %v195
    %v267 = vunpack.c.l.b16 %v196
    %v268 = vunpack.c.l.b16 %v197
    %v269 = vunpack.c.l.b16 %v198
    %v270 = vpack.c.b16 %v239, %v238
    %v271 = vpack.c.b16 %v241, %v240
    %v272 = vpack.c.b16 %v243, %v242
    %v273 = vpack.c.b16 %v245, %v244
    %v274 = vpack.c.b16 %v247, %v246
    %v275 = vpack.c.b16 %v249, %v248
    %v276 = vpack.c.b16 %v251, %v250
    %v277 = vpack.c.b16 %v253, %v252
    %v278 = vpack.c.b16 %v255, %v254
    %v279 = vpack.c.b16 %v257, %v256
    %v280 = vpack.c.b16 %v259, %v258
    %v281 = vpack.c.b16 %v261, %v260
    %v282 = vpack.c.b16 %v263, %v262
    %v283 = vpack.c.b16 %v265, %v264
    %v284 = vpack.c.b16 %v267, %v266
    %v285 = vpack.c.b16 %v269, %v268
    %302 = vmatprep.subr.bf16.mxu0 0
    %303 = vmatpush1.bf16.msra.mxu0 %v270
    %304 = vmatprep.subr.bf16.mxu0 0
    %305 = vmatpush1.bf16.msra.mxu0 %v271
    %306 = vmatprep.subr.bf16.mxu0 0
    %307 = vmatpush1.bf16.msra.mxu0 %v272
    %308 = vmatprep.subr.bf16.mxu0 0
    %309 = vmatpush1.bf16.msra.mxu0 %v273
    %310 = vmatprep.subr.bf16.mxu0 0
    %311 = vmatpush1.bf16.msra.mxu0 %v274
    %312 = vmatprep.subr.bf16.mxu0 0
    %313 = vmatpush1.bf16.msra.mxu0 %v275
    %314 = vmatprep.subr.bf16.mxu0 0
    %315 = vmatpush1.bf16.msra.mxu0 %v276
    %316 = vmatprep.subr.bf16.mxu0 0
    %317 = vmatpush1.bf16.msra.mxu0 %v277
    %318 = vmatprep.subr.bf16.mxu0 0
    %319 = vmatpush1.bf16.msra.mxu0 %v278
    %320 = vmatprep.subr.bf16.mxu0 0
    %321 = vmatpush1.bf16.msra.mxu0 %v279
    %322 = vmatprep.subr.bf16.mxu0 0
    %323 = vmatpush1.bf16.msra.mxu0 %v280
    %324 = vmatprep.subr.bf16.mxu0 0
    %325 = vmatpush1.bf16.msra.mxu0 %v281
    %326 = vmatprep.subr.bf16.mxu0 0
    %327 = vmatpush1.bf16.msra.mxu0 %v282
    %328 = vmatprep.subr.bf16.mxu0 0
    %329 = vmatpush1.bf16.msra.mxu0 %v283
    %330 = vmatprep.subr.bf16.mxu0 0
    %331 = vmatpush1.bf16.msra.mxu0 %v284
    %332 = vmatprep.subr.bf16.mxu0 0
    %333 = vmatpush1.bf16.msra.mxu0 %v285
    %334 = vmatprep.mubr.bf16.mxu0 %v166
    %335 = vmatmul.mubr.bf16.gmra.mrb[0].mxu0 %v165
    %v336 = vpop.f32.mrb[0].mxu0
    %v337 = vadd.f32 %v204, %v336
    %v338 = vpop.f32.mrb[0].mxu0
    %v339 = vpop.f32.mrb[0].mxu0
    %v340 = vpop.f32.mrb[0].mxu0
    %341 = vdwg.mxu0
    %v342 = vmax.f32 %v337, 0.0
    %v343 = vpack.c.bf16 %v342, %v342
    %v344 = vld [vmem:[#allocation8] sm:$0xf]
    %v345 = vld [vmem:[#allocation8 + $0x4] sm:$0xf]
    %v346 = vld [vmem:[#allocation8 + $0x8] sm:$0xf]
    %v347 = vld [vmem:[#allocation8 + $0xc] sm:$0xf]
    %v348 = vld [vmem:[#allocation8 + $0x10] sm:$0xf]
    %v349 = vld [vmem:[#allocation8 + $0x14] sm:$0xf]
    %v350 = vld [vmem:[#allocation8 + $0x18] sm:$0xf]
    %v351 = vld [vmem:[#allocation8 + $0x1c] sm:$0xf]
    %v352 = vld [vmem:[#allocation8 + $0x20] sm:$0xf]
    %v353 = vld [vmem:[#allocation8 + $0x24] sm:$0xf]
    %v354 = vld [vmem:[#allocation8 + $0x28] sm:$0xf]
    %v355 = vld [vmem:[#allocation8 + $0x2c] sm:$0xf]
    %v356 = vld [vmem:[#allocation8 + $0x30] sm:$0xf]
    %v357 = vld [vmem:[#allocation8 + $0x34] sm:$0xf]
    %v358 = vld [vmem:[#allocation8 + $0x38] sm:$0xf]
    %v359 = vld [vmem:[#allocation8 + $0x3c] sm:$0xf]
    %v360 = vld [vmem:[%s6] sm:$0x1]
    %v362 = vlaneseq
    %v363 = vshrl.u32 %v362, 7
    %v364 = vsub.s32 0, %v363
    %v365 = vrot.slane %v360, %v364
    %v383 = vunpack.c.l.b16 %v344
    %v384 = vunpack.c.l.b16 %v345
    %v385 = vunpack.c.l.b16 %v346
    %v386 = vunpack.c.l.b16 %v347
    %v387 = vunpack.c.l.b16 %v348
    %v388 = vunpack.c.l.b16 %v349
    %v389 = vunpack.c.l.b16 %v350
    %v390 = vunpack.c.l.b16 %v351
    %v391 = vunpack.c.l.b16 %v352
    %v392 = vunpack.c.l.b16 %v353
    %v393 = vunpack.c.l.b16 %v354
    %v394 = vunpack.c.l.b16 %v355
    %v395 = vunpack.c.l.b16 %v356
    %v396 = vunpack.c.l.b16 %v357
    %v397 = vunpack.c.l.b16 %v358
    %v398 = vunpack.c.l.b16 %v359
    %v399 = vpack.c.b16 %v384, %v383
    %v400 = vpack.c.b16 %v386, %v385
    %v401 = vpack.c.b16 %v388, %v387
    %v402 = vpack.c.b16 %v390, %v389
    %v403 = vpack.c.b16 %v392, %v391
    %v404 = vpack.c.b16 %v394, %v393
    %v405 = vpack.c.b16 %v396, %v395
    %v406 = vpack.c.b16 %v398, %v397
    %415 = vmatprep.subr.bf16.mxu0 0
    %416 = vmatpush1.bf16.msra.mxu0 %v399
    %417 = vmatprep.subr.bf16.mxu0 0
    %418 = vmatpush1.bf16.msra.mxu0 %v400
    %419 = vmatprep.subr.bf16.mxu0 0
    %420 = vmatpush1.bf16.msra.mxu0 %v401
    %421 = vmatprep.subr.bf16.mxu0 0
    %422 = vmatpush1.bf16.msra.mxu0 %v402
    %423 = vmatprep.subr.bf16.mxu0 0
    %424 = vmatpush1.bf16.msra.mxu0 %v403
    %425 = vmatprep.subr.bf16.mxu0 0
    %426 = vmatpush1.bf16.msra.mxu0 %v404
    %427 = vmatprep.subr.bf16.mxu0 0
    %428 = vmatpush1.bf16.msra.mxu0 %v405
    %429 = vmatprep.subr.bf16.mxu0 0
    %430 = vmatpush1.bf16.msra.mxu0 %v406
    %431 = vmatprep.subr.bf16.mxu0 0
    %432 = vmatpush1.bf16.msra.mxu0 0
    %433 = vmatprep.subr.bf16.mxu0 0
    %434 = vmatpush1.bf16.msra.mxu0 0
    %435 = vmatprep.subr.bf16.mxu0 0
    %436 = vmatpush1.bf16.msra.mxu0 0
    %437 = vmatprep.subr.bf16.mxu0 0
    %438 = vmatpush1.bf16.msra.mxu0 0
    %439 = vmatprep.subr.bf16.mxu0 0
    %440 = vmatpush1.bf16.msra.mxu0 0
    %441 = vmatprep.subr.bf16.mxu0 0
    %442 = vmatpush1.bf16.msra.mxu0 0
    %443 = vmatprep.subr.bf16.mxu0 0
    %444 = vmatpush1.bf16.msra.mxu0 0
    %445 = vmatprep.subr.bf16.mxu0 0
    %446 = vmatpush1.bf16.msra.mxu0 0
    %447 = vmatprep.mubr.bf16.mxu0 0
    %448 = vmatmul.mubr.bf16.gmra.mrb[0].mxu0 %v343
    %v449 = vpop.f32.mrb[0].mxu0
    %v450 = vadd.f32 %v365, %v449
    %v451 = vpop.f32.mrb[0].mxu0
    %v452 = vpop.f32.mrb[0].mxu0
    %v453 = vpop.f32.mrb[0].mxu0
    %454 = vdwg.mxu0
    %v455 = vlaneseq
    %v456 = vand.u32 %v455, 127
    %vm457 = vcmp.lt.s32.totalorder %v456, 8
    %v458 = vsel %vm457, %v450, -inf
    %459 = vmax.xlane.f32.xlu0 %v458
    %v460 = vpop.xlane.xlu0 %459
    %v461 = vsub.f32 %v458, %v460
    %v462 = vmul.f32 %v461, 1.442695
    %v463 = vpow.pop %v462
    %464 = vadd.xlane.f32.xlu0 %v463
    %v465 = vpop.xlane.xlu0 %464
    %v466 = vrcp.pop %v465
    %v467 = vmul.f32 %v463, %v466
    %v468 = vsub.f32 0.0, %v450
    %v469 = vmul.f32 %v468, 1.442695
    %v470 = vpow.pop %v469
    %v471 = vadd.f32 %v470, 1.0
    %v472 = vrcp.pop %v471
    %v473 = vsel %vm457, %v467, %v472
    %474 = vst [vmem:[#allocation10] sm:$0xff] %v473
    // Predicated region
    $region46: #{tpu_custom_call.1} parent=1 // pred_check
      _
    $region47: #{tpu_custom_call.1} parent=1 // pred_check_branch
      %476 = sbr.rel (0) target = $region49
    $region48: #{tpu_custom_call.1} parent=1 // pred_region
      %s478 = ssub.s32 128, 128
      %479 = vsyncadd [#allocation4], %s478
      %s481 = sshll.u32 [#allocation10], 4
      %s482 = int_to_ptr.vmem [resolvable:$true] %s481
      %484 = dma.vmem_to_hbm [thread:$0]  %s482, 128, %s7, [#allocation4]
    $region49: #{tpu_custom_call.1} parent=1 // pred_fallthru
      _
    // Predicated region
    $region50: #{tpu_custom_call.1} parent=1 // pred_check
      _
    $region51: #{tpu_custom_call.1} parent=1 // pred_check_branch
      %486 = sbr.rel (0) target = $region53
    $region52: #{tpu_custom_call.1} parent=1 // pred_region
      %487 = dma.done [#allocation4], 128
    $region53: #{tpu_custom_call.1} parent=1 // pred_fallthru
      _
    %488 = vsyncpa [#allocation3], 1
    %489 = vsyncpa [#allocation6], 1
    %490 = vsyncpa [#allocation9], 1
    %491 = vsyncpa [#allocation4], 1

</llo_original>
